<compile_context>
chip_gen: v7x
topology: tpu7x:2x2x1
jax: 0.10.0
libtpu: 0.0.40
codegen_flags: <defaults>
</compile_context>

<pallas_src>
import functools

import numpy as np

import jax
import jax.numpy as jnp
from jax.experimental import pallas as pl
from jax.experimental.pallas import tpu as pltpu

P = 128   # lane width every channel dimension is padded to
RF = 4    # receptive field of out[:, :, -1] through three k=3/pad=1 convs


def _round_up(n, m):
    return ((n + m - 1) // m) * m


# --------------------------------------------------------------------------- #
# Kernel
# --------------------------------------------------------------------------- #
def _cnn_tail_kernel(x_ref, w1_ref, w2_ref, w3_ref, b_ref, out_ref, *, cout_pad):
    # x_ref : (BT, Cin*4)         last 4 input samples, batch-major, (c, t) order
    # w1_ref: (Cin*4, 3*128)      fused layer-1 tap matrix (3 tail positions)
    # w2_ref: (3*128, 2*128)      fused layer-2 tap matrix (2 tail positions)
    # w3_ref: (2*128, 128)        fused layer-3 tap matrix (last position only)
    # b_ref : (1, 6*128) f32      [b1 b1 b1 | b2 b2 | b3], lane-padded
    # out_ref: (BT, cout_pad)     slim f32 output block, cout_pad = round_up(Cout, 8)
    def mm(a, w):
        # bf16 operands on v6e/v7x, f32 on v5e; always accumulate in f32.
        return jnp.dot(a.astype(w.dtype), w, preferred_element_type=jnp.float32)

    b1 = b_ref[:, 0:3 * P]
    b2 = b_ref[:, 3 * P:5 * P]
    b3 = b_ref[:, 5 * P:6 * P]

    h1 = jnp.maximum(mm(x_ref[...], w1_ref[...]) + b1, 0.0)   # (BT, 384)
    h2 = jnp.maximum(mm(h1, w2_ref[...]) + b2, 0.0)           # (BT, 256)
    y = mm(h2, w3_ref[...]) + b3                               # (BT, 128)
    out_ref[...] = y[:, :cout_pad]


# --------------------------------------------------------------------------- #
# Weight packing
# --------------------------------------------------------------------------- #
def _pack_numpy(params):
    """Build the fused, lane-aligned tap matrices (float64 numpy).

    Tail position t = 0..3 corresponds to original position L-4+t.  Each layer's
    LHS carries one 128-lane block per tail position it was produced at; column
    blocks are the tail positions the layer must produce.  A tap that would read
    past tail position 3 is the conv's right zero pad and is simply absent.
    """
    w1 = np.asarray(params["w1"], np.float64)   # (32,  Cin, 3)  PyTorch Conv1d layout
    w2 = np.asarray(params["w2"], np.float64)   # (64,  32,  3)
    w3 = np.asarray(params["w3"], np.float64)   # (Cout,64,  3)
    b1 = np.asarray(params["b1"], np.float64)
    b2 = np.asarray(params["b2"], np.float64)
    b3 = np.asarray(params["b3"], np.float64)

    c1, cin, k1 = w1.shape
    c2 = w2.shape[0]
    c3 = w3.shape[0]
    if k1 != 3 or w2.shape[2] != 3 or w3.shape[2] != 3:
        raise ValueError("expected kernel_size=3 convolutions")
    if w2.shape[1] != c1 or w3.shape[1] != c2:
        raise ValueError("channel chain mismatch between conv layers")
    # Review fix: refuse to silently clamp channels past the 128 packed lanes.
    if max(c1, c2, c3) > P:
        raise ValueError(f"channel counts must be <= {P}, got {(c1, c2, c3)}")

    # Layer 1.  LHS row r = c*RF + t (matches x[:, :, L-4:].reshape(B, Cin*4)).
    # Column block (p-1) is the pre-activation at tail position p in {1,2,3};
    # the contributing tap is k = t - p + 1.
    w1big = np.zeros((cin * RF, 3 * P), np.float64)
    for p in (1, 2, 3):
        for t in range(RF):
            k = t - p + 1
            if 0 <= k <= 2:
                rows = np.arange(cin) * RF + t
                w1big[rows, (p - 1) * P:(p - 1) * P + c1] = w1[:, :, k].T

    # Layer 2.  LHS is h1 = (B, 3*128); block j holds tail position t = j+1.
    # Column block (p-2) for p in {2,3}; tap k = (j+1) - p + 1.
    w2big = np.zeros((3 * P, 2 * P), np.float64)
    for p in (2, 3):
        for j in range(3):
            k = (j + 1) - p + 1
            if 0 <= k <= 2:
                w2big[j * P:j * P + c1, (p - 2) * P:(p - 2) * P + c2] = w2[:, :, k].T

    # Layer 3.  LHS is h2 = (B, 2*128); block j holds tail position t = j+2.
    # Only the last position (p=3) is produced; tap k = (j+2) - 3 + 1 = j.
    w3big = np.zeros((2 * P, P), np.float64)
    for j in range(2):
        w3big[j * P:j * P + c2, :c3] = w3[:, :, j].T

    def pad_lane(b, c):
        out = np.zeros((P,), np.float64)
        out[:c] = b
        return out

    bias = np.concatenate([np.tile(pad_lane(b1, c1), 3),
                           np.tile(pad_lane(b2, c2), 2),
                           pad_lane(b3, c3)])[None, :]          # (1, 6*128)

    return {"w1": w1big, "w2": w2big, "w3": w3big, "b": bias}


def pack_params(params, dtype=jnp.float32):
    """Pack Conv1d params for the kernel.

    dtype=jnp.bfloat16 is the recommended setting on v6e/v7x (halves weight and
    input DMA bytes, native-speed MXU); accumulation is f32 either way and the
    bias/ReLU epilogue stays f32 so the packing is also v5e-safe.
    """
    p = _pack_numpy(params)
    return {"w1": jnp.asarray(p["w1"], dtype),
            "w2": jnp.asarray(p["w2"], dtype),
            "w3": jnp.asarray(p["w3"], dtype),
            "b": jnp.asarray(p["b"], jnp.float32)}


# --------------------------------------------------------------------------- #
# Forward wrapper
# --------------------------------------------------------------------------- #
@functools.partial(jax.jit, static_argnames=("c_out",))
def cnn_forward(x, packed, c_out):
    """x: (B, Cin, L) float.  Returns (B, c_out) == CNNModel(x)[:, :, -1]."""
    B, Cin, L = x.shape
    assert c_out <= P, "output channels must be <= 128"
    # Only the last RF=4 positions influence out[:, :, -1].
    assert L >= RF, "fast path needs L >= 4"
    # TODO(synk): add a full-length / left-zero-padded fallback for L < 4.

    cout_pad = max(8, _round_up(c_out, 8))
    in_dtype = packed["w1"].dtype           # bf16 on v6e/v7x packs, f32 otherwise

    # Batch-major tail, no transpose: row layout (c, t) matches the w1 packing.
    x_flat = x[:, :, L - RF:].reshape(B, Cin * RF).astype(in_dtype)

    # Batch tile: <= 128 rows (keeps the live set inside the 64-vreg file) and,
    # whenever B > 8, at least 2 grid steps so both v7x TensorCores get work.
    b8 = _round_up(B, 8)
    bt = b8 if b8 <= 8 else min(128, _round_up((b8 + 1) // 2, 8))
    b_pad = _round_up(B, bt)
    if b_pad != B:
        # Padded rows see zero inputs -> relu(bias) chains only (finite, no NaNs);
        # they are sliced away below.
        x_flat = jnp.pad(x_flat, ((0, b_pad - B), (0, 0)))

    out = pl.pallas_call(
        functools.partial(_cnn_tail_kernel, cout_pad=cout_pad),
        out_shape=jax.ShapeDtypeStruct((b_pad, cout_pad), jnp.float32),
        grid_spec=pltpu.PrefetchScalarGridSpec(
            num_scalar_prefetch=0,
            grid=(b_pad // bt,),
            in_specs=[
                pl.BlockSpec((bt, Cin * RF), lambda i: (i, 0)),
                # Weights/bias: constant index_map -> fetched once and kept in
                # VMEM (~0.6 MiB even double-buffered; no vmem override needed).
                pl.BlockSpec(packed["w1"].shape, lambda i: (0, 0)),
                pl.BlockSpec(packed["w2"].shape, lambda i: (0, 0)),
                pl.BlockSpec(packed["w3"].shape, lambda i: (0, 0)),
                pl.BlockSpec(packed["b"].shape, lambda i: (0, 0)),
            ],
            out_specs=pl.BlockSpec((bt, cout_pad), lambda i: (i, 0)),
        ),
        compiler_params=pltpu.CompilerParams(
            dimension_semantics=("parallel",)),
    )(x_flat, packed["w1"], packed["w2"], packed["w3"], packed["b"])

    return out[:B, :c_out]


# --------------------------------------------------------------------------- #
# Init + references
# --------------------------------------------------------------------------- #
def init_params(key, input_size, output_size):
    ks = jax.random.split(key, 6)

    def u(k, shape, fan_in):
        s = 1.0 / np.sqrt(float(fan_in))
        return jax.random.uniform(k, shape, jnp.float32, -s, s)

    return {  # PyTorch Conv1d layout: weight (Cout, Cin, k), bias (Cout,)
        "w1": u(ks[0], (32, input_size, 3), input_size * 3),
        "b1": u(ks[1], (32,), input_size * 3),
        "w2": u(ks[2], (64, 32, 3), 32 * 3),
        "b2": u(ks[3], (64,), 32 * 3),
        "w3": u(ks[4], (output_size, 64, 3), 64 * 3),
        "b3": u(ks[5], (output_size,), 64 * 3),
    }


def _reference_np(x, params):
    """float64 numpy replica of the PyTorch CNNModel forward."""
    def conv1d(h, w, b):
        bsz, _, length = h.shape
        hp = np.pad(h, ((0, 0), (0, 0), (1, 1)))
        out = np.zeros((bsz, w.shape[0], length), np.float64)
        for k in range(3):
            out += np.einsum("oc,bcl->bol", w[:, :, k], hp[:, :, k:k + length])
        return out + b[None, :, None]

    w1, w2, w3 = (np.asarray(params[k], np.float64) for k in ("w1", "w2", "w3"))
    b1, b2, b3 = (np.asarray(params[k], np.float64) for k in ("b1", "b2", "b3"))
    h = np.maximum(conv1d(np.asarray(x, np.float64), w1, b1), 0.0)
    h = np.maximum(conv1d(h, w2, b2), 0.0)
    h = conv1d(h, w3, b3)
    return h[:, :, -1]


def _packed_forward_np(x, packed_np, c_out):
    """float64 numpy replay of the kernel's fused math (validates the packing)."""
    bsz, cin, length = x.shape
    xf = np.asarray(x, np.float64)[:, :, length - RF:].reshape(bsz, cin * RF)
    b = packed_np["b"]
    h1 = np.maximum(xf @ packed_np["w1"] + b[:, :3 * P], 0.0)
    h2 = np.maximum(h1 @ packed_np["w2"] + b[:, 3 * P:5 * P], 0.0)
    y = h2 @ packed_np["w3"] + b[:, 5 * P:]
    return y[:, :c_out]


# --------------------------------------------------------------------------- #
# Demo / self-test
# --------------------------------------------------------------------------- #
if __name__ == "__main__":
    key = jax.random.PRNGKey(0)
    k_x, k_p = jax.random.split(key)

    # Small shapes; B=20 exercises batch padding and a >1-step "parallel" grid.
    B, C_IN, L, C_OUT = 20, 4, 16, 6
    x = jax.random.normal(k_x, (B, C_IN, L), jnp.float32)
    params = init_params(k_p, input_size=C_IN, output_size=C_OUT)

    x_np = np.asarray(x)
    y_ref = _reference_np(x_np, params)

    # 1) Exact (float64) validation of the fused weight packing / layout.
    pack_err = float(np.max(np.abs(
        _packed_forward_np(x_np, _pack_numpy(params), C_OUT) - y_ref)))
    assert pack_err < 1e-9, f"weight packing mismatch: {pack_err}"

    # 2) TPU kernel, f32-packed weights (v5e default configuration).
    packed_f32 = pack_params(params, jnp.float32)
    y = cnn_forward(x, packed_f32, c_out=C_OUT)
    jax.block_until_ready(y)
    assert y.shape == (B, C_OUT), y.shape
    err = float(np.max(np.abs(np.asarray(y, np.float64) - y_ref)))
    # Tolerance covers possible bf16 MXU passes under default f32 matmul
    # precision; packing/layout bugs (O(1) errors) are caught by check (1).
    assert err < 2e-2, f"f32 kernel vs reference: {err}"

    # 3) bf16-packed weights/inputs (the recommended v6e/v7x configuration).
    packed_bf16 = pack_params(params, jnp.bfloat16)
    y16 = cnn_forward(x, packed_bf16, c_out=C_OUT)
    jax.block_until_ready(y16)
    assert y16.shape == (B, C_OUT), y16.shape
    err16 = float(np.max(np.abs(np.asarray(y16, np.float64) - y_ref)))
    assert err16 < 1e-1, f"bf16 kernel vs reference: {err16}"

    print("KERNEL_OK")
</pallas_src>

<mosaic_0001>
module attributes {stable_mosaic.version = 11 : i64} {
  func.func @_cnn_tail_kernel(%arg0: i32, %arg1: memref<16x16xf32, #tpu.memory_space<vmem>>, %arg2: memref<16x384xf32, #tpu.memory_space<vmem>>, %arg3: memref<384x256xf32, #tpu.memory_space<vmem>>, %arg4: memref<256x128xf32, #tpu.memory_space<vmem>>, %arg5: memref<1x768xf32, #tpu.memory_space<vmem>>, %arg6: memref<16x8xf32, #tpu.memory_space<vmem>>) attributes {dimension_semantics = [#tpu.dimension_semantics<parallel>], iteration_bounds = array<i64: 2>, scalar_prefetch = 0 : i64, scratch_operands = 0 : i64, tpu.core_type = #tpu.core_type<tc>, window_params = [{transform_indices = @transform_0, window_bounds = array<i64: 16, 16>}, {pipeline_mode = #tpu.pipeline_mode<synchronous>, transform_indices = @transform_1, window_bounds = array<i64: 16, 384>}, {pipeline_mode = #tpu.pipeline_mode<synchronous>, transform_indices = @transform_2, window_bounds = array<i64: 384, 256>}, {pipeline_mode = #tpu.pipeline_mode<synchronous>, transform_indices = @transform_3, window_bounds = array<i64: 256, 128>}, {pipeline_mode = #tpu.pipeline_mode<synchronous>, transform_indices = @transform_4, window_bounds = array<i64: 1, 768>}, {transform_indices = @transform_5, window_bounds = array<i64: 16, 8>}]} {
    %c0 = arith.constant 0 : index
    %c0_0 = arith.constant 0 : index
    %0 = vector.load %arg5[%c0, %c0_0] : memref<1x768xf32, #tpu.memory_space<vmem>>, vector<1x384xf32>
    %c0_1 = arith.constant 0 : index
    %c384 = arith.constant 384 : index
    %1 = vector.load %arg5[%c0_1, %c384] : memref<1x768xf32, #tpu.memory_space<vmem>>, vector<1x256xf32>
    %c0_2 = arith.constant 0 : index
    %c640 = arith.constant 640 : index
    %2 = vector.load %arg5[%c0_2, %c640] : memref<1x768xf32, #tpu.memory_space<vmem>>, vector<1x128xf32>
    %c0_3 = arith.constant 0 : index
    %c0_4 = arith.constant 0 : index
    %3 = vector.load %arg1[%c0_3, %c0_4] : memref<16x16xf32, #tpu.memory_space<vmem>>, vector<16x16xf32>
    %c0_5 = arith.constant 0 : index
    %c0_6 = arith.constant 0 : index
    %4 = vector.load %arg2[%c0_5, %c0_6] : memref<16x384xf32, #tpu.memory_space<vmem>>, vector<16x384xf32>
    %cst = arith.constant dense<0.000000e+00> : vector<16x384xf32>
    %5 = tpu.matmul %3, %4, %cst {dimension_numbers = #tpu.dot_dimension_numbers<[1], [0], [0], [1], [0, 0, 1, 1], [], []>} : vector<16x16xf32>, vector<16x384xf32>, vector<16x384xf32> -> vector<16x384xf32>
    %6 = vector.broadcast %0 : vector<1x384xf32> to vector<16x384xf32>
    %7 = arith.addf %5, %6 : vector<16x384xf32>
    %cst_7 = arith.constant 0.000000e+00 : f32
    %8 = vector.broadcast %cst_7 : f32 to vector<16x384xf32>
    %9 = arith.maximumf %7, %8 : vector<16x384xf32>
    %c0_8 = arith.constant 0 : index
    %c0_9 = arith.constant 0 : index
    %10 = vector.load %arg3[%c0_8, %c0_9] : memref<384x256xf32, #tpu.memory_space<vmem>>, vector<384x256xf32>
    %cst_10 = arith.constant dense<0.000000e+00> : vector<16x256xf32>
    %11 = tpu.matmul %9, %10, %cst_10 {dimension_numbers = #tpu.dot_dimension_numbers<[1], [0], [0], [1], [0, 0, 1, 1], [], []>} : vector<16x384xf32>, vector<384x256xf32>, vector<16x256xf32> -> vector<16x256xf32>
    %12 = vector.broadcast %1 : vector<1x256xf32> to vector<16x256xf32>
    %13 = arith.addf %11, %12 : vector<16x256xf32>
    %cst_11 = arith.constant 0.000000e+00 : f32
    %14 = vector.broadcast %cst_11 : f32 to vector<16x256xf32>
    %15 = arith.maximumf %13, %14 : vector<16x256xf32>
    %c0_12 = arith.constant 0 : index
    %c0_13 = arith.constant 0 : index
    %16 = vector.load %arg4[%c0_12, %c0_13] : memref<256x128xf32, #tpu.memory_space<vmem>>, vector<256x128xf32>
    %cst_14 = arith.constant dense<0.000000e+00> : vector<16x128xf32>
    %17 = tpu.matmul %15, %16, %cst_14 {dimension_numbers = #tpu.dot_dimension_numbers<[1], [0], [0], [1], [0, 0, 1, 1], [], []>} : vector<16x256xf32>, vector<256x128xf32>, vector<16x128xf32> -> vector<16x128xf32>
    %18 = vector.broadcast %2 : vector<1x128xf32> to vector<16x128xf32>
    %19 = arith.addf %17, %18 : vector<16x128xf32>
    %20 = vector.extract_strided_slice %19 {offsets = [0, 0], sizes = [16, 8], strides = [1, 1]} : vector<16x128xf32> to vector<16x8xf32>
    %c0_15 = arith.constant 0 : index
    %c0_16 = arith.constant 0 : index
    %21 = vector.load %arg6[%c0_15, %c0_16] : memref<16x8xf32, #tpu.memory_space<vmem>>, vector<16x8xf32>
    tpu.vector_store %arg6[%c0_15, %c0_16], %20 {strides = array<i32>} : memref<16x8xf32, #tpu.memory_space<vmem>>, vector<16x8xf32>,
    return
  }
  func.func @transform_0(%arg0: i32) -> (i32, i32) {
    %c0_i32 = arith.constant 0 : i32
    %c0_i32_0 = arith.constant 0 : i32
    return %arg0, %c0_i32 : i32, i32
  }
  func.func @transform_1(%arg0: i32) -> (i32, i32) {
    %c0_i32 = arith.constant 0 : i32
    %c0_i32_0 = arith.constant 0 : i32
    %c0_i32_1 = arith.constant 0 : i32
    return %c0_i32, %c0_i32_0 : i32, i32
  }
  func.func @transform_2(%arg0: i32) -> (i32, i32) {
    %c0_i32 = arith.constant 0 : i32
    %c0_i32_0 = arith.constant 0 : i32
    %c0_i32_1 = arith.constant 0 : i32
    return %c0_i32, %c0_i32_0 : i32, i32
  }
  func.func @transform_3(%arg0: i32) -> (i32, i32) {
    %c0_i32 = arith.constant 0 : i32
    %c0_i32_0 = arith.constant 0 : i32
    %c0_i32_1 = arith.constant 0 : i32
    return %c0_i32, %c0_i32_0 : i32, i32
  }
  func.func @transform_4(%arg0: i32) -> (i32, i32) {
    %c0_i32 = arith.constant 0 : i32
    %c0_i32_0 = arith.constant 0 : i32
    %c0_i32_1 = arith.constant 0 : i32
    return %c0_i32, %c0_i32_0 : i32, i32
  }
  func.func @transform_5(%arg0: i32) -> (i32, i32) {
    %c0_i32 = arith.constant 0 : i32
    %c0_i32_0 = arith.constant 0 : i32
    return %arg0, %c0_i32 : i32, i32
  }
}

</mosaic_0001>

<llo_original>
// kernel: cnn_forward.1
$region0: #{cnn_forward.1}
  #allocation0 [shape = 'u32[]', space=smem, size = 0x4, offset = 0x4, fixed_abs, tag = 'smem constant byte address 0x4 - core index']
  #allocation1 [shape = 'u32[144,128]{1,0:T(1,128)}', space=vmem, size = 0x12000, scoped, tag = 'internal scratch']
  %s0 = inlined_call_operand.vmem [shape: f32[32,16], index: 0, kind: input, shape index: {}]
  %s1 = inlined_call_operand.vmem [shape: f32[16,384], index: 1, kind: input, shape index: {}]
  %s2 = inlined_call_operand.hbm [shape: f32[384,256], index: 2, kind: input, shape index: {}]
  %s3 = inlined_call_operand.hbm [shape: f32[256,128], index: 3, kind: input, shape index: {}]
  %s4 = inlined_call_operand.vmem [shape: f32[1,768], index: 4, kind: input, shape index: {}]
  %s5 = inlined_call_operand.vmem [shape: f32[32,8], index: 5, kind: output, shape index: {}]
  %s6 = sld [smem:[#allocation0]]
  $region61: #{cnn_forward.1} parent=0
    _
  %s8 = ssub.s32 1, %s6
  %s9 = scalar_select 0, %s8, %s6
  $region1: #{cnn_forward.1} parent=0
    #allocation2 [shape = 'u8[393216]{0}', space=vmem, size = 0x60000, scoped, tag = 'input window, operand 2, single buffered']
    #allocation3 [shape = 's32[2]{0}', space=sflag, size = 0x8, scoped, tag = 'scoped memory for cnn_forward.1']
    #allocation4 [shape = 'u8[131072]{0}', space=vmem, size = 0x20000, scoped, tag = 'input window, operand 3, single buffered']
    #allocation5 [shape = 's32[1]{0}', space=sflag, size = 0x4, scoped, tag = 'scoped memory for cnn_forward.1']
    %10 = vsyncpa [#allocation3], 0
    %11 = vsyncpa [#allocation5], 0
    loop: start=0, step=1, limit=4
    $region2: #{cnn_forward.1} parent=1 // loop_pre_header
      _
    $region3: #{cnn_forward.1} parent=1 // loop_header
      %s13 = sphi 0, %s17
      %p14 = scmp.ge.s32.totalorder %s13, 4
      %s23 = sphi 0, %s25
      %s26 = sphi 0, %s23
      %s27 = sphi 0, %s26
      %s43 = sphi 0, %s27
      %s47 = sphi 0, %s47
      %s49 = sphi 0, %s47
      %s50 = sphi 0, %s49
      %s64 = sphi 0, %s50
      %s68 = sphi 0, %s68
      %s70 = sphi 0, %s68
      %s71 = sphi 0, %s70
      %s85 = sphi 0, %s71
      %s89 = sphi 0, %s89
      %s91 = sphi 0, %s89
      %s92 = sphi 0, %s91
      %s106 = sphi 0, %s92
      %s110 = sphi 0, %s110
      %s112 = sphi 0, %s110
      %s113 = sphi 0, %s112
      %s127 = sphi 0, %s113
      %s133 = sphi 0, %s135
      %s136 = sphi 0, %s133
      %s137 = sphi 0, %s136
      %s153 = sphi 0, %s137
    $region4: #{cnn_forward.1} parent=1 // loop_header_branch
      %16 = sbr.rel (%p14) target = $region8
    $region5: #{cnn_forward.1} parent=1 // loop_body
      %s18 = ssub.s32 %s13, 1
      %s19 = ssub.s32 %s13, 2
      %s20 = sadd.s32 %s13, 1
      %s21 = ssub.s32 %s13, %s20
      %p22 = scmp.eq.s32.totalorder %s21, 0
      %s24 = sadd.s32 %s23, 1
      %s25 = scalar_select %p22, %s23, %s24
      %p28 = pneg %p22
      %p29 = scmp.eq.s32.totalorder %s13, 1
      %p30 = por %p28, %p29
      %p31 = scmp.ne.s32.totalorder %s23, %s26
      %p32 = scmp.eq.s32.totalorder %s13, 0
      %p33 = por %p31, %p32
      %p34 = scmp.ne.s32.totalorder %s23, %s26
      %p35 = scmp.eq.s32.totalorder %s18, 1
      %p36 = por %p34, %p35
      %p37 = scmp.ne.s32.totalorder %s26, %s27
      %p38 = scmp.eq.s32.totalorder %s18, 0
      %p39 = por %p37, %p38
      %p40 = scmp.ne.s32.totalorder %s26, %s27
      %p41 = scmp.eq.s32.totalorder %s19, 1
      %p42 = por %p40, %p41
      %p44 = scmp.ne.s32.totalorder %s27, %s43
      %p45 = scmp.eq.s32.totalorder %s19, 0
      %p46 = por %p44, %p45
      %s48 = sadd.s32 %s47, 1
      %p51 = scmp.eq.s32.totalorder %s13, 1
      %p52 = scmp.ne.s32.totalorder %s47, %s49
      %p53 = scmp.eq.s32.totalorder %s13, 0
      %p54 = por %p52, %p53
      %p55 = scmp.ne.s32.totalorder %s47, %s49
      %p56 = scmp.eq.s32.totalorder %s18, 1
      %p57 = por %p55, %p56
      %p58 = scmp.ne.s32.totalorder %s49, %s50
      %p59 = scmp.eq.s32.totalorder %s18, 0
      %p60 = por %p58, %p59
      %p61 = scmp.ne.s32.totalorder %s49, %s50
      %p62 = scmp.eq.s32.totalorder %s19, 1
      %p63 = por %p61, %p62
      %p65 = scmp.ne.s32.totalorder %s50, %s64
      %p66 = scmp.eq.s32.totalorder %s19, 0
      %p67 = por %p65, %p66
      %s69 = sadd.s32 %s68, 1
      %p72 = scmp.eq.s32.totalorder %s13, 1
      %p73 = scmp.ne.s32.totalorder %s68, %s70
      %p74 = scmp.eq.s32.totalorder %s13, 0
      %p75 = por %p73, %p74
      %p76 = scmp.ne.s32.totalorder %s68, %s70
      %p77 = scmp.eq.s32.totalorder %s18, 1
      %p78 = por %p76, %p77
      %p79 = scmp.ne.s32.totalorder %s70, %s71
      %p80 = scmp.eq.s32.totalorder %s18, 0
      %p81 = por %p79, %p80
      %p82 = scmp.ne.s32.totalorder %s70, %s71
      %p83 = scmp.eq.s32.totalorder %s19, 1
      %p84 = por %p82, %p83
      %p86 = scmp.ne.s32.totalorder %s71, %s85
      %p87 = scmp.eq.s32.totalorder %s19, 0
      %p88 = por %p86, %p87
      %s90 = sadd.s32 %s89, 1
      %p93 = scmp.eq.s32.totalorder %s13, 1
      %p94 = scmp.ne.s32.totalorder %s89, %s91
      %p95 = scmp.eq.s32.totalorder %s13, 0
      %p96 = por %p94, %p95
      %p97 = scmp.ne.s32.totalorder %s89, %s91
      %p98 = scmp.eq.s32.totalorder %s18, 1
      %p99 = por %p97, %p98
      %p100 = scmp.ne.s32.totalorder %s91, %s92
      %p101 = scmp.eq.s32.totalorder %s18, 0
      %p102 = por %p100, %p101
      %p103 = scmp.ne.s32.totalorder %s91, %s92
      %p104 = scmp.eq.s32.totalorder %s19, 1
      %p105 = por %p103, %p104
      %p107 = scmp.ne.s32.totalorder %s92, %s106
      %p108 = scmp.eq.s32.totalorder %s19, 0
      %p109 = por %p107, %p108
      %s111 = sadd.s32 %s110, 1
      %p114 = scmp.eq.s32.totalorder %s13, 1
      %p115 = scmp.ne.s32.totalorder %s110, %s112
      %p116 = scmp.eq.s32.totalorder %s13, 0
      %p117 = por %p115, %p116
      %p118 = scmp.ne.s32.totalorder %s110, %s112
      %p119 = scmp.eq.s32.totalorder %s18, 1
      %p120 = por %p118, %p119
      %p121 = scmp.ne.s32.totalorder %s112, %s113
      %p122 = scmp.eq.s32.totalorder %s18, 0
      %p123 = por %p121, %p122
      %p124 = scmp.ne.s32.totalorder %s112, %s113
      %p125 = scmp.eq.s32.totalorder %s19, 1
      %p126 = por %p124, %p125
      %p128 = scmp.ne.s32.totalorder %s113, %s127
      %p129 = scmp.eq.s32.totalorder %s19, 0
      %p130 = por %p128, %p129
      %s131 = ssub.s32 %s13, %s20
      %p132 = scmp.eq.s32.totalorder %s131, 0
      %s134 = sadd.s32 %s133, 1
      %s135 = scalar_select %p132, %s133, %s134
      %p138 = pneg %p132
      %p139 = scmp.eq.s32.totalorder %s13, 1
      %p140 = por %p138, %p139
      %p141 = scmp.ne.s32.totalorder %s133, %s136
      %p142 = scmp.eq.s32.totalorder %s13, 0
      %p143 = por %p141, %p142
      %p144 = scmp.ne.s32.totalorder %s133, %s136
      %p145 = scmp.eq.s32.totalorder %s18, 1
      %p146 = por %p144, %p145
      %p147 = scmp.ne.s32.totalorder %s136, %s137
      %p148 = scmp.eq.s32.totalorder %s18, 0
      %p149 = por %p147, %p148
      %p150 = scmp.ne.s32.totalorder %s136, %s137
      %p151 = scmp.eq.s32.totalorder %s19, 1
      %p152 = por %p150, %p151
      %p154 = scmp.ne.s32.totalorder %s137, %s153
      %p155 = scmp.eq.s32.totalorder %s19, 0
      %p156 = por %p154, %p155
      %p157 = scmp.le.s32.totalorder 1, %s13
      %p158 = scmp.lt.s32.totalorder %s13, 3
      %p159 = pnand %p157, %p158
      %p160 = pneg %p159
      // Predicated region
      $region9: #{cnn_forward.1} parent=5 // pred_check
        _
      $region10: #{cnn_forward.1} parent=5 // pred_check_branch
        %162 = sbr.rel (%p159) target = $region12
      $region11: #{cnn_forward.1} parent=5 // pred_region
        %s163 = ssub.s32 %s13, 1
        // Predicated region
        $region13: #{cnn_forward.1} parent=11 // pred_check
          %p164 = pneg %p60
        $region14: #{cnn_forward.1} parent=11 // pred_check_branch
          %166 = sbr.rel (%p164) target = $region16
        $region15: #{cnn_forward.1} parent=11 // pred_region
          _
        $region16: #{cnn_forward.1} parent=11 // pred_fallthru
          _
        // Predicated region
        $region17: #{cnn_forward.1} parent=11 // pred_check
          %p167 = pneg %p81
        $region18: #{cnn_forward.1} parent=11 // pred_check_branch
          %169 = sbr.rel (%p167) target = $region20
        $region19: #{cnn_forward.1} parent=11 // pred_region
          %s171 = ssub.s32 12288, 12288
          %172 = vsyncadd [#allocation3], %s171
          %s173 = sshll.u32 [#allocation2], 4
          %s174 = int_to_ptr.vmem [resolvable:$true] %s173
          %179 = dma.hbm_to_vmem [thread:$0]  %s2, 12288, %s174, [#allocation3], 256, 256, 16
        $region20: #{cnn_forward.1} parent=11 // pred_fallthru
          _
        // Predicated region
        $region21: #{cnn_forward.1} parent=11 // pred_check
          %p180 = pneg %p102
        $region22: #{cnn_forward.1} parent=11 // pred_check_branch
          %182 = sbr.rel (%p180) target = $region24
        $region23: #{cnn_forward.1} parent=11 // pred_region
          %s184 = ssub.s32 4096, 4096
          %185 = vsyncadd [#allocation5], %s184
          %s186 = sshll.u32 [#allocation4], 4
          %s187 = int_to_ptr.vmem [resolvable:$true] %s186
          %192 = dma.hbm_to_vmem [thread:$0]  %s3, 4096, %s187, [#allocation5], 128, 128, 8
        $region24: #{cnn_forward.1} parent=11 // pred_fallthru
          _
        // Predicated region
        $region25: #{cnn_forward.1} parent=11 // pred_check
          %p193 = pneg %p123
        $region26: #{cnn_forward.1} parent=11 // pred_check_branch
          %195 = sbr.rel (%p193) target = $region28
        $region27: #{cnn_forward.1} parent=11 // pred_region
          _
        $region28: #{cnn_forward.1} parent=11 // pred_fallthru
          _
      $region12: #{cnn_forward.1} parent=5 // pred_fallthru
        _
      %p196 = scmp.lt.s32.totalorder %s13, 2
      // Predicated region
      $region29: #{cnn_forward.1} parent=5 // pred_check
        %p197 = pneg %p196
      $region30: #{cnn_forward.1} parent=5 // pred_check_branch
        %199 = sbr.rel (%p197) target = $region32
      $region31: #{cnn_forward.1} parent=5 // pred_region
        // Predicated region
        $region33: #{cnn_forward.1} parent=31 // pred_check
          %p200 = pneg %p33
        $region34: #{cnn_forward.1} parent=31 // pred_check_branch
          %202 = sbr.rel (%p200) target = $region36
        $region35: #{cnn_forward.1} parent=31 // pred_region
          %s203 = smul.u32 2, %s13
          %p204 = scmp.lt.s32.totalorder %s203, 3
          %s205 = scalar_select %p204, %s203, 3
          %s206 = smul.addr %s205, 8
          %s207 = scalar_lea.vmem %s0, %s206
          %s208 = smul.u32 2, %s13
        $region36: #{cnn_forward.1} parent=31 // pred_fallthru
          _
      $region32: #{cnn_forward.1} parent=5 // pred_fallthru
        _
      %p209 = scmp.le.s32.totalorder 1, %s13
      %p210 = scmp.lt.s32.totalorder %s13, 3
      %p211 = pnand %p209, %p210
      %p212 = pneg %p211
      // Predicated region
      $region37: #{cnn_forward.1} parent=5 // pred_check
        _
      $region38: #{cnn_forward.1} parent=5 // pred_check_branch
        %214 = sbr.rel (%p211) target = $region40
      $region39: #{cnn_forward.1} parent=5 // pred_region
        %s215 = ssub.s32 %s13, 1
        // Predicated region
        $region41: #{cnn_forward.1} parent=39 // pred_check
          %p216 = pneg %p81
        $region42: #{cnn_forward.1} parent=39 // pred_check_branch
          %218 = sbr.rel (%p216) target = $region44
        $region43: #{cnn_forward.1} parent=39 // pred_region
          %219 = dma.done [#allocation3], 12288
        $region44: #{cnn_forward.1} parent=39 // pred_fallthru
          _
        // Predicated region
        $region45: #{cnn_forward.1} parent=39 // pred_check
          %p220 = pneg %p102
        $region46: #{cnn_forward.1} parent=39 // pred_check_branch
          %222 = sbr.rel (%p220) target = $region48
        $region47: #{cnn_forward.1} parent=39 // pred_region
          %223 = dma.done [#allocation5], 4096
        $region48: #{cnn_forward.1} parent=39 // pred_fallthru
          _
        %s224 = smul.u32 2, %s18
        %p225 = scmp.lt.s32.totalorder %s224, 3
        %s226 = scalar_select %p225, %s224, 3
        %s227 = smul.addr %s226, 8
        %s228 = scalar_lea.vmem %s0, %s227
        %p229 = pneg %p39
        %p230 = pneg %p36
        %p231 = pneg %p60
        %p232 = pneg %p57
        %p233 = pneg %p81
        %p234 = pneg %p78
        %p235 = pneg %p102
        %p236 = pneg %p99
        %p237 = pneg %p123
        %p238 = pneg %p120
        %p239 = pneg %p149
        %p240 = pneg %p146
        %s241 = smul.u32 2, %s18
        %p242 = scmp.lt.s32.totalorder %s241, 3
        %s243 = scalar_select %p242, %s241, 3
        %s244 = smul.addr %s243, 8
        %s245 = scalar_lea.vmem %s5, %s244
        %s246 = smul.u32 2, %s18
        %p247 = scmp.lt.s32.totalorder %s246, 3
        %s248 = scalar_select %p247, %s246, 3
        %s249 = smul.addr %s248, 8
        %s250 = scalar_lea.vmem %s0, %s249
        %s251 = smul.u32 2, %s18
        %s252 = smul.u32 2, %s18
        %p253 = scmp.lt.s32.totalorder %s252, 3
        %s254 = scalar_select %p253, %s252, 3
        %s255 = smul.addr %s254, 8
        %s256 = scalar_lea.vmem %s5, %s255
        %s257 = smul.u32 2, %s18
        %v258 = vld [vmem:[%s4] sm:$0x7]
        %v259 = vld [vmem:[%s4 + $0x3] sm:$0x3]
        %v260 = vld [vmem:[%s4 + $0x5] sm:$0x1]
        %v261 = vld [vmem:[%s250] sm:$0xff]
        %v262 = vld [vmem:[%s250 + $0x8] sm:$0xff]
        %v263 = vld [vmem:[%s1] sm:$0xff]
        %v264 = vld [vmem:[%s1 + $0x8] sm:$0xff]
        %v265 = vld [vmem:[%s1 + $0x10] sm:$0xff]
        %v266 = vld [vmem:[%s1 + $0x18] sm:$0xff]
        %v267 = vld [vmem:[%s1 + $0x20] sm:$0xff]
        %v268 = vld [vmem:[%s1 + $0x28] sm:$0xff]
        %v270 = vlaneseq
        %v271 = vshrl.u32 %v270, 7
        %v272 = vsub.s32 0, %v271
        %v273 = vrot.slane %v258, %v272
        %v274 = vlaneseq
        %v275 = vshrl.u32 %v274, 7
        %v276 = vsub.s32 1, %v275
        %v277 = vrot.slane %v258, %v276
        %v278 = vlaneseq
        %v279 = vshrl.u32 %v278, 7
        %v280 = vsub.s32 2, %v279
        %v281 = vrot.slane %v258, %v280
        %vm285 = vcmask 130048
        %v287 = vsel %vm285, %v261, 0
        %v290 = vsel %vm285, %v262, 0
        %292 = vmatprep.subr.mxu0 %v264
        %293 = vmatpush1.msra.mxu0 %v263
        %294 = vmatprep.subr.mxu0 %v267
        %295 = vmatpush1.msra.mxu0 %v266
        %296 = vmatprep.subr.mxu0 0.0
        %297 = vmatpush1.msra.mxu0 0.0
        %298 = vmatprep.subr.mxu0 0.0
        %299 = vmatpush1.msra.mxu0 0.0
        %300 = vmatprep.subr.mxu0 0.0
        %301 = vmatpush1.msra.mxu0 0.0
        %302 = vmatprep.subr.mxu0 0.0
        %303 = vmatpush1.msra.mxu0 0.0
        %304 = vmatprep.subr.mxu0 0.0
        %305 = vmatpush1.msra.mxu0 0.0
        %306 = vmatprep.subr.mxu0 0.0
        %307 = vmatpush1.msra.mxu0 0.0
        %308 = vmatprep.subr.mxu0 0.0
        %309 = vmatpush1.msra.mxu0 0.0
        %310 = vmatprep.subr.mxu0 0.0
        %311 = vmatpush1.msra.mxu0 0.0
        %312 = vmatprep.subr.mxu0 0.0
        %313 = vmatpush1.msra.mxu0 0.0
        %314 = vmatprep.subr.mxu0 0.0
        %315 = vmatpush1.msra.mxu0 0.0
        %316 = vmatprep.subr.mxu0 0.0
        %317 = vmatpush1.msra.mxu0 0.0
        %318 = vmatprep.subr.mxu0 0.0
        %319 = vmatpush1.msra.mxu0 0.0
        %320 = vmatprep.subr.mxu0 0.0
        %321 = vmatpush1.msra.mxu0 0.0
        %322 = vmatprep.subr.mxu0 0.0
        %323 = vmatpush1.msra.mxu0 0.0
        %324 = vmatprep.subr.mxu0 0.0
        %325 = vmatpush1.msra.mxu0 0.0
        %326 = vmatprep.subr.mxu0 0.0
        %327 = vmatpush1.msra.mxu0 0.0
        %328 = vmatprep.subr.mxu0 0.0
        %329 = vmatpush1.msra.mxu0 0.0
        %330 = vmatprep.subr.mxu0 0.0
        %331 = vmatpush1.msra.mxu0 0.0
        %332 = vmatprep.subr.mxu0 0.0
        %333 = vmatpush1.msra.mxu0 0.0
        %334 = vmatprep.subr.mxu0 0.0
        %335 = vmatpush1.msra.mxu0 0.0
        %336 = vmatprep.subr.mxu0 0.0
        %337 = vmatpush1.msra.mxu0 0.0
        %338 = vmatprep.subr.mxu0 0.0
        %339 = vmatpush1.msra.mxu0 0.0
        %340 = vmatprep.subr.mxu0 0.0
        %341 = vmatpush1.msra.mxu0 0.0
        %342 = vmatprep.subr.mxu0 0.0
        %343 = vmatpush1.msra.mxu0 0.0
        %344 = vmatprep.subr.mxu0 0.0
        %345 = vmatpush1.msra.mxu0 0.0
        %346 = vmatprep.subr.mxu0 0.0
        %347 = vmatpush1.msra.mxu0 0.0
        %348 = vmatprep.subr.mxu0 0.0
        %349 = vmatpush1.msra.mxu0 0.0
        %350 = vmatprep.subr.mxu0 0.0
        %351 = vmatpush1.msra.mxu0 0.0
        %352 = vmatprep.subr.mxu0 0.0
        %353 = vmatpush1.msra.mxu0 0.0
        %354 = vmatprep.subr.mxu0 0.0
        %355 = vmatpush1.msra.mxu0 0.0
        %356 = vmatprep.mubr.f32.mxu0 0.0
        %357 = vmatmul.mubr.f32.gmra.mrb[0].mxu0 %v287
        %v358 = vpop.f32.mrb[0].mxu0
        %v359 = vadd.f32 %v273, %v358
        %v360 = vpop.f32.mrb[0].mxu0
        %v361 = vadd.f32 %v277, %v360
        %362 = vmatprep.mubr.f32.mxu0 0.0
        %363 = vmatmul.mubr.f32.gmra.mrb[0].mxu0 %v290
        %v364 = vpop.f32.mrb[0].mxu0
        %v365 = vadd.f32 %v273, %v364
        %v366 = vpop.f32.mrb[0].mxu0
        %v367 = vadd.f32 %v277, %v366
        %368 = vdwg.mxu0
        %369 = vmatprep.subr.mxu0 0.0
        %370 = vmatpush1.msra.mxu0 %v265
        %371 = vmatprep.subr.mxu0 0.0
        %372 = vmatpush1.msra.mxu0 %v268
        %373 = vmatprep.subr.mxu0 0.0
        %374 = vmatpush1.msra.mxu0 0.0
        %375 = vmatprep.subr.mxu0 0.0
        %376 = vmatpush1.msra.mxu0 0.0
        %377 = vmatprep.subr.mxu0 0.0
        %378 = vmatpush1.msra.mxu0 0.0
        %379 = vmatprep.subr.mxu0 0.0
        %380 = vmatpush1.msra.mxu0 0.0
        %381 = vmatprep.subr.mxu0 0.0
        %382 = vmatpush1.msra.mxu0 0.0
        %383 = vmatprep.subr.mxu0 0.0
        %384 = vmatpush1.msra.mxu0 0.0
        %385 = vmatprep.subr.mxu0 0.0
        %386 = vmatpush1.msra.mxu0 0.0
        %387 = vmatprep.subr.mxu0 0.0
        %388 = vmatpush1.msra.mxu0 0.0
        %389 = vmatprep.subr.mxu0 0.0
        %390 = vmatpush1.msra.mxu0 0.0
        %391 = vmatprep.subr.mxu0 0.0
        %392 = vmatpush1.msra.mxu0 0.0
        %393 = vmatprep.subr.mxu0 0.0
        %394 = vmatpush1.msra.mxu0 0.0
        %395 = vmatprep.subr.mxu0 0.0
        %396 = vmatpush1.msra.mxu0 0.0
        %397 = vmatprep.subr.mxu0 0.0
        %398 = vmatpush1.msra.mxu0 0.0
        %399 = vmatprep.subr.mxu0 0.0
        %400 = vmatpush1.msra.mxu0 0.0
        %401 = vmatprep.subr.mxu0 0.0
        %402 = vmatpush1.msra.mxu0 0.0
        %403 = vmatprep.subr.mxu0 0.0
        %404 = vmatpush1.msra.mxu0 0.0
        %405 = vmatprep.subr.mxu0 0.0
        %406 = vmatpush1.msra.mxu0 0.0
        %407 = vmatprep.subr.mxu0 0.0
        %408 = vmatpush1.msra.mxu0 0.0
        %409 = vmatprep.subr.mxu0 0.0
        %410 = vmatpush1.msra.mxu0 0.0
        %411 = vmatprep.subr.mxu0 0.0
        %412 = vmatpush1.msra.mxu0 0.0
        %413 = vmatprep.subr.mxu0 0.0
        %414 = vmatpush1.msra.mxu0 0.0
        %415 = vmatprep.subr.mxu0 0.0
        %416 = vmatpush1.msra.mxu0 0.0
        %417 = vmatprep.subr.mxu0 0.0
        %418 = vmatpush1.msra.mxu0 0.0
        %419 = vmatprep.subr.mxu0 0.0
        %420 = vmatpush1.msra.mxu0 0.0
        %421 = vmatprep.subr.mxu0 0.0
        %422 = vmatpush1.msra.mxu0 0.0
        %423 = vmatprep.subr.mxu0 0.0
        %424 = vmatpush1.msra.mxu0 0.0
        %425 = vmatprep.subr.mxu0 0.0
        %426 = vmatpush1.msra.mxu0 0.0
        %427 = vmatprep.subr.mxu0 0.0
        %428 = vmatpush1.msra.mxu0 0.0
        %429 = vmatprep.subr.mxu0 0.0
        %430 = vmatpush1.msra.mxu0 0.0
        %431 = vmatprep.subr.mxu0 0.0
        %432 = vmatpush1.msra.mxu0 0.0
        %433 = vmatprep.mubr.f32.mxu0 0.0
        %434 = vmatmul.mubr.f32.gmra.mrb[0].mxu0 %v287
        %v435 = vpop.f32.mrb[0].mxu0
        %v436 = vadd.f32 %v281, %v435
        %v437 = vpop.f32.mrb[0].mxu0
        %438 = vmatprep.mubr.f32.mxu0 0.0
        %439 = vmatmul.mubr.f32.gmra.mrb[0].mxu0 %v290
        %v440 = vpop.f32.mrb[0].mxu0
        %v441 = vadd.f32 %v281, %v440
        %v442 = vpop.f32.mrb[0].mxu0
        %443 = vdwg.mxu0
        %v444 = vmax.f32 %v359, 0.0
        %v445 = vmax.f32 %v361, 0.0
        %v446 = vmax.f32 %v436, 0.0
        %v447 = vmax.f32 %v365, 0.0
        %v448 = vmax.f32 %v367, 0.0
        %v449 = vmax.f32 %v441, 0.0
        %v450 = vld [vmem:[#allocation2] sm:$0xff]
        %v451 = vld [vmem:[#allocation2 + $0x8] sm:$0xff]
        %v452 = vld [vmem:[#allocation2 + $0x10] sm:$0xff]
        %v453 = vld [vmem:[#allocation2 + $0x18] sm:$0xff]
        %v454 = vld [vmem:[#allocation2 + $0x20] sm:$0xff]
        %v455 = vld [vmem:[#allocation2 + $0x28] sm:$0xff]
        %v456 = vld [vmem:[#allocation2 + $0x30] sm:$0xff]
        %v457 = vld [vmem:[#allocation2 + $0x38] sm:$0xff]
        %v458 = vld [vmem:[#allocation2 + $0x40] sm:$0xff]
        %v459 = vld [vmem:[#allocation2 + $0x48] sm:$0xff]
        %v460 = vld [vmem:[#allocation2 + $0x50] sm:$0xff]
        %v461 = vld [vmem:[#allocation2 + $0x58] sm:$0xff]
        %v462 = vld [vmem:[#allocation2 + $0x60] sm:$0xff]
        %v463 = vld [vmem:[#allocation2 + $0x68] sm:$0xff]
        %v464 = vld [vmem:[#allocation2 + $0x70] sm:$0xff]
        %v465 = vld [vmem:[#allocation2 + $0x78] sm:$0xff]
        %v466 = vld [vmem:[#allocation2 + $0x80] sm:$0xff]
        %v467 = vld [vmem:[#allocation2 + $0x88] sm:$0xff]
        %v468 = vld [vmem:[#allocation2 + $0x90] sm:$0xff]
        %v469 = vld [vmem:[#allocation2 + $0x98] sm:$0xff]
        %v470 = vld [vmem:[#allocation2 + $0xa0] sm:$0xff]
        %v471 = vld [vmem:[#allocation2 + $0xa8] sm:$0xff]
        %v472 = vld [vmem:[#allocation2 + $0xb0] sm:$0xff]
        %v473 = vld [vmem:[#allocation2 + $0xb8] sm:$0xff]
        %v474 = vld [vmem:[#allocation2 + $0xc0] sm:$0xff]
        %v475 = vld [vmem:[#allocation2 + $0xc8] sm:$0xff]
        %v476 = vld [vmem:[#allocation2 + $0xd0] sm:$0xff]
        %v477 = vld [vmem:[#allocation2 + $0xd8] sm:$0xff]
        %v478 = vld [vmem:[#allocation2 + $0xe0] sm:$0xff]
        %v479 = vld [vmem:[#allocation2 + $0xe8] sm:$0xff]
        %v480 = vld [vmem:[#allocation2 + $0xf0] sm:$0xff]
        %v481 = vld [vmem:[#allocation2 + $0xf8] sm:$0xff]
        %v482 = vld [vmem:[#allocation2 + $0x100] sm:$0xff]
        %v483 = vld [vmem:[#allocation2 + $0x108] sm:$0xff]
        %v484 = vld [vmem:[#allocation2 + $0x110] sm:$0xff]
        %v485 = vld [vmem:[#allocation2 + $0x118] sm:$0xff]
        %v486 = vld [vmem:[#allocation2 + $0x120] sm:$0xff]
        %v487 = vld [vmem:[#allocation2 + $0x128] sm:$0xff]
        %v488 = vld [vmem:[#allocation2 + $0x130] sm:$0xff]
        %v489 = vld [vmem:[#allocation2 + $0x138] sm:$0xff]
        %v490 = vld [vmem:[#allocation2 + $0x140] sm:$0xff]
        %v491 = vld [vmem:[#allocation2 + $0x148] sm:$0xff]
        %v492 = vld [vmem:[#allocation2 + $0x150] sm:$0xff]
        %v493 = vld [vmem:[#allocation2 + $0x158] sm:$0xff]
        %v494 = vld [vmem:[#allocation2 + $0x160] sm:$0xff]
        %v495 = vld [vmem:[#allocation2 + $0x168] sm:$0xff]
        %v496 = vld [vmem:[#allocation2 + $0x170] sm:$0xff]
        %v497 = vld [vmem:[#allocation2 + $0x178] sm:$0xff]
        %v498 = vld [vmem:[#allocation2 + $0x180] sm:$0xff]
        %v499 = vld [vmem:[#allocation2 + $0x188] sm:$0xff]
        %v500 = vld [vmem:[#allocation2 + $0x190] sm:$0xff]
        %v501 = vld [vmem:[#allocation2 + $0x198] sm:$0xff]
        %v502 = vld [vmem:[#allocation2 + $0x1a0] sm:$0xff]
        %v503 = vld [vmem:[#allocation2 + $0x1a8] sm:$0xff]
        %v504 = vld [vmem:[#allocation2 + $0x1b0] sm:$0xff]
        %v505 = vld [vmem:[#allocation2 + $0x1b8] sm:$0xff]
        %v506 = vld [vmem:[#allocation2 + $0x1c0] sm:$0xff]
        %v507 = vld [vmem:[#allocation2 + $0x1c8] sm:$0xff]
        %v508 = vld [vmem:[#allocation2 + $0x1d0] sm:$0xff]
        %v509 = vld [vmem:[#allocation2 + $0x1d8] sm:$0xff]
        %v510 = vld [vmem:[#allocation2 + $0x1e0] sm:$0xff]
        %v511 = vld [vmem:[#allocation2 + $0x1e8] sm:$0xff]
        %v512 = vld [vmem:[#allocation2 + $0x1f0] sm:$0xff]
        %v513 = vld [vmem:[#allocation2 + $0x1f8] sm:$0xff]
        %v514 = vld [vmem:[#allocation2 + $0x200] sm:$0xff]
        %v515 = vld [vmem:[#allocation2 + $0x208] sm:$0xff]
        %v516 = vld [vmem:[#allocation2 + $0x210] sm:$0xff]
        %v517 = vld [vmem:[#allocation2 + $0x218] sm:$0xff]
        %v518 = vld [vmem:[#allocation2 + $0x220] sm:$0xff]
        %v519 = vld [vmem:[#allocation2 + $0x228] sm:$0xff]
        %v520 = vld [vmem:[#allocation2 + $0x230] sm:$0xff]
        %v521 = vld [vmem:[#allocation2 + $0x238] sm:$0xff]
        %v522 = vld [vmem:[#allocation2 + $0x240] sm:$0xff]
        %v523 = vld [vmem:[#allocation2 + $0x248] sm:$0xff]
        %v524 = vld [vmem:[#allocation2 + $0x250] sm:$0xff]
        %v525 = vld [vmem:[#allocation2 + $0x258] sm:$0xff]
        %v526 = vld [vmem:[#allocation2 + $0x260] sm:$0xff]
        %v527 = vld [vmem:[#allocation2 + $0x268] sm:$0xff]
        %v528 = vld [vmem:[#allocation2 + $0x270] sm:$0xff]
        %v529 = vld [vmem:[#allocation2 + $0x278] sm:$0xff]
        %v530 = vld [vmem:[#allocation2 + $0x280] sm:$0xff]
        %v531 = vld [vmem:[#allocation2 + $0x288] sm:$0xff]
        %v532 = vld [vmem:[#allocation2 + $0x290] sm:$0xff]
        %v533 = vld [vmem:[#allocation2 + $0x298] sm:$0xff]
        %v534 = vld [vmem:[#allocation2 + $0x2a0] sm:$0xff]
        %v535 = vld [vmem:[#allocation2 + $0x2a8] sm:$0xff]
        %v536 = vld [vmem:[#allocation2 + $0x2b0] sm:$0xff]
        %v537 = vld [vmem:[#allocation2 + $0x2b8] sm:$0xff]
        %v538 = vld [vmem:[#allocation2 + $0x2c0] sm:$0xff]
        %v539 = vld [vmem:[#allocation2 + $0x2c8] sm:$0xff]
        %v540 = vld [vmem:[#allocation2 + $0x2d0] sm:$0xff]
        %v541 = vld [vmem:[#allocation2 + $0x2d8] sm:$0xff]
        %v542 = vld [vmem:[#allocation2 + $0x2e0] sm:$0xff]
        %v543 = vld [vmem:[#allocation2 + $0x2e8] sm:$0xff]
        %v544 = vld [vmem:[#allocation2 + $0x2f0] sm:$0xff]
        %v545 = vld [vmem:[#allocation2 + $0x2f8] sm:$0xff]
        %v547 = vlaneseq
        %v548 = vshrl.u32 %v547, 7
        %v549 = vsub.s32 0, %v548
        %v550 = vrot.slane %v259, %v549
        %v551 = vlaneseq
        %v552 = vshrl.u32 %v551, 7
        %v553 = vsub.s32 1, %v552
        %v554 = vrot.slane %v259, %v553
        %557 = vmatprep.subr.mxu0 %v451
        %558 = vmatpush1.msra.mxu0 %v450
        %559 = vmatprep.subr.mxu0 %v453
        %560 = vmatpush1.msra.mxu0 %v452
        %561 = vmatprep.subr.mxu0 %v455
        %562 = vmatpush1.msra.mxu0 %v454
        %563 = vmatprep.subr.mxu0 %v457
        %564 = vmatpush1.msra.mxu0 %v456
        %565 = vmatprep.subr.mxu0 %v459
        %566 = vmatpush1.msra.mxu0 %v458
        %567 = vmatprep.subr.mxu0 %v461
        %568 = vmatpush1.msra.mxu0 %v460
        %569 = vmatprep.subr.mxu0 %v463
        %570 = vmatpush1.msra.mxu0 %v462
        %571 = vmatprep.subr.mxu0 %v465
        %572 = vmatpush1.msra.mxu0 %v464
        %573 = vmatprep.subr.mxu0 %v467
        %574 = vmatpush1.msra.mxu0 %v466
        %575 = vmatprep.subr.mxu0 %v469
        %576 = vmatpush1.msra.mxu0 %v468
        %577 = vmatprep.subr.mxu0 %v471
        %578 = vmatpush1.msra.mxu0 %v470
        %579 = vmatprep.subr.mxu0 %v473
        %580 = vmatpush1.msra.mxu0 %v472
        %581 = vmatprep.subr.mxu0 %v475
        %582 = vmatpush1.msra.mxu0 %v474
        %583 = vmatprep.subr.mxu0 %v477
        %584 = vmatpush1.msra.mxu0 %v476
        %585 = vmatprep.subr.mxu0 %v479
        %586 = vmatpush1.msra.mxu0 %v478
        %587 = vmatprep.subr.mxu0 %v481
        %588 = vmatpush1.msra.mxu0 %v480
        %589 = vmatprep.subr.mxu0 %v483
        %590 = vmatpush1.msra.mxu0 %v482
        %591 = vmatprep.subr.mxu0 %v485
        %592 = vmatpush1.msra.mxu0 %v484
        %593 = vmatprep.subr.mxu0 %v487
        %594 = vmatpush1.msra.mxu0 %v486
        %595 = vmatprep.subr.mxu0 %v489
        %596 = vmatpush1.msra.mxu0 %v488
        %597 = vmatprep.subr.mxu0 %v491
        %598 = vmatpush1.msra.mxu0 %v490
        %599 = vmatprep.subr.mxu0 %v493
        %600 = vmatpush1.msra.mxu0 %v492
        %601 = vmatprep.subr.mxu0 %v495
        %602 = vmatpush1.msra.mxu0 %v494
        %603 = vmatprep.subr.mxu0 %v497
        %604 = vmatpush1.msra.mxu0 %v496
        %605 = vmatprep.subr.mxu0 %v499
        %606 = vmatpush1.msra.mxu0 %v498
        %607 = vmatprep.subr.mxu0 %v501
        %608 = vmatpush1.msra.mxu0 %v500
        %609 = vmatprep.subr.mxu0 %v503
        %610 = vmatpush1.msra.mxu0 %v502
        %611 = vmatprep.subr.mxu0 %v505
        %612 = vmatpush1.msra.mxu0 %v504
        %613 = vmatprep.subr.mxu0 %v507
        %614 = vmatpush1.msra.mxu0 %v506
        %615 = vmatprep.subr.mxu0 %v509
        %616 = vmatpush1.msra.mxu0 %v508
        %617 = vmatprep.subr.mxu0 %v511
        %618 = vmatpush1.msra.mxu0 %v510
        %619 = vmatprep.subr.mxu0 %v513
        %620 = vmatpush1.msra.mxu0 %v512
        %621 = vmatprep.mubr.f32.mxu0 %v445
        %622 = vmatmul.mubr.f32.gmra.mrb[0].mxu0 %v444
        %v623 = vpop.f32.mrb[0].mxu0
        %v624 = vadd.f32 %v550, %v623
        %v625 = vpop.f32.mrb[0].mxu0
        %v626 = vadd.f32 %v554, %v625
        %627 = vmatprep.mubr.f32.mxu0 %v448
        %628 = vmatmul.mubr.f32.gmra.mrb[0].mxu0 %v447
        %v629 = vpop.f32.mrb[0].mxu0
        %v630 = vadd.f32 %v550, %v629
        %v631 = vpop.f32.mrb[0].mxu0
        %v632 = vadd.f32 %v554, %v631
        %633 = vdwg.mxu0
        %634 = vmatprep.subr.mxu0 %v515
        %635 = vmatpush1.msra.mxu0 %v514
        %636 = vmatprep.subr.mxu0 %v517
        %637 = vmatpush1.msra.mxu0 %v516
        %638 = vmatprep.subr.mxu0 %v519
        %639 = vmatpush1.msra.mxu0 %v518
        %640 = vmatprep.subr.mxu0 %v521
        %641 = vmatpush1.msra.mxu0 %v520
        %642 = vmatprep.subr.mxu0 %v523
        %643 = vmatpush1.msra.mxu0 %v522
        %644 = vmatprep.subr.mxu0 %v525
        %645 = vmatpush1.msra.mxu0 %v524
        %646 = vmatprep.subr.mxu0 %v527
        %647 = vmatpush1.msra.mxu0 %v526
        %648 = vmatprep.subr.mxu0 %v529
        %649 = vmatpush1.msra.mxu0 %v528
        %650 = vmatprep.subr.mxu0 %v531
        %651 = vmatpush1.msra.mxu0 %v530
        %652 = vmatprep.subr.mxu0 %v533
        %653 = vmatpush1.msra.mxu0 %v532
        %654 = vmatprep.subr.mxu0 %v535
        %655 = vmatpush1.msra.mxu0 %v534
        %656 = vmatprep.subr.mxu0 %v537
        %657 = vmatpush1.msra.mxu0 %v536
        %658 = vmatprep.subr.mxu0 %v539
        %659 = vmatpush1.msra.mxu0 %v538
        %660 = vmatprep.subr.mxu0 %v541
        %661 = vmatpush1.msra.mxu0 %v540
        %662 = vmatprep.subr.mxu0 %v543
        %663 = vmatpush1.msra.mxu0 %v542
        %664 = vmatprep.subr.mxu0 %v545
        %665 = vmatpush1.msra.mxu0 %v544
        %666 = vmatprep.subr.mxu0 0.0
        %667 = vmatpush1.msra.mxu0 0.0
        %668 = vmatprep.subr.mxu0 0.0
        %669 = vmatpush1.msra.mxu0 0.0
        %670 = vmatprep.subr.mxu0 0.0
        %671 = vmatpush1.msra.mxu0 0.0
        %672 = vmatprep.subr.mxu0 0.0
        %673 = vmatpush1.msra.mxu0 0.0
        %674 = vmatprep.subr.mxu0 0.0
        %675 = vmatpush1.msra.mxu0 0.0
        %676 = vmatprep.subr.mxu0 0.0
        %677 = vmatpush1.msra.mxu0 0.0
        %678 = vmatprep.subr.mxu0 0.0
        %679 = vmatpush1.msra.mxu0 0.0
        %680 = vmatprep.subr.mxu0 0.0
        %681 = vmatpush1.msra.mxu0 0.0
        %682 = vmatprep.subr.mxu0 0.0
        %683 = vmatpush1.msra.mxu0 0.0
        %684 = vmatprep.subr.mxu0 0.0
        %685 = vmatpush1.msra.mxu0 0.0
        %686 = vmatprep.subr.mxu0 0.0
        %687 = vmatpush1.msra.mxu0 0.0
        %688 = vmatprep.subr.mxu0 0.0
        %689 = vmatpush1.msra.mxu0 0.0
        %690 = vmatprep.subr.mxu0 0.0
        %691 = vmatpush1.msra.mxu0 0.0
        %692 = vmatprep.subr.mxu0 0.0
        %693 = vmatpush1.msra.mxu0 0.0
        %694 = vmatprep.subr.mxu0 0.0
        %695 = vmatpush1.msra.mxu0 0.0
        %696 = vmatprep.subr.mxu0 0.0
        %697 = vmatpush1.msra.mxu0 0.0
        %698 = vmatprep.mubr.f32.mxu0 0.0
        %699 = vmatmul.mubr.f32.gmra.mrb[0].mxu0 %v446
        %v700 = vpop.f32.mrb[0].mxu0
        %v701 = vadd.f32 %v624, %v700
        %v702 = vpop.f32.mrb[0].mxu0
        %v703 = vadd.f32 %v626, %v702
        %704 = vmatprep.mubr.f32.mxu0 0.0
        %705 = vmatmul.mubr.f32.gmra.mrb[0].mxu0 %v449
        %v706 = vpop.f32.mrb[0].mxu0
        %v707 = vadd.f32 %v630, %v706
        %v708 = vpop.f32.mrb[0].mxu0
        %v709 = vadd.f32 %v632, %v708
        %710 = vdwg.mxu0
        %v711 = vmax.f32 %v701, 0.0
        %v712 = vmax.f32 %v703, 0.0
        %v713 = vmax.f32 %v707, 0.0
        %v714 = vmax.f32 %v709, 0.0
        %v715 = vld [vmem:[#allocation4] sm:$0xff]
        %v716 = vld [vmem:[#allocation4 + $0x8] sm:$0xff]
        %v717 = vld [vmem:[#allocation4 + $0x10] sm:$0xff]
        %v718 = vld [vmem:[#allocation4 + $0x18] sm:$0xff]
        %v719 = vld [vmem:[#allocation4 + $0x20] sm:$0xff]
        %v720 = vld [vmem:[#allocation4 + $0x28] sm:$0xff]
        %v721 = vld [vmem:[#allocation4 + $0x30] sm:$0xff]
        %v722 = vld [vmem:[#allocation4 + $0x38] sm:$0xff]
        %v723 = vld [vmem:[#allocation4 + $0x40] sm:$0xff]
        %v724 = vld [vmem:[#allocation4 + $0x48] sm:$0xff]
        %v725 = vld [vmem:[#allocation4 + $0x50] sm:$0xff]
        %v726 = vld [vmem:[#allocation4 + $0x58] sm:$0xff]
        %v727 = vld [vmem:[#allocation4 + $0x60] sm:$0xff]
        %v728 = vld [vmem:[#allocation4 + $0x68] sm:$0xff]
        %v729 = vld [vmem:[#allocation4 + $0x70] sm:$0xff]
        %v730 = vld [vmem:[#allocation4 + $0x78] sm:$0xff]
        %v731 = vld [vmem:[#allocation4 + $0x80] sm:$0xff]
        %v732 = vld [vmem:[#allocation4 + $0x88] sm:$0xff]
        %v733 = vld [vmem:[#allocation4 + $0x90] sm:$0xff]
        %v734 = vld [vmem:[#allocation4 + $0x98] sm:$0xff]
        %v735 = vld [vmem:[#allocation4 + $0xa0] sm:$0xff]
        %v736 = vld [vmem:[#allocation4 + $0xa8] sm:$0xff]
        %v737 = vld [vmem:[#allocation4 + $0xb0] sm:$0xff]
        %v738 = vld [vmem:[#allocation4 + $0xb8] sm:$0xff]
        %v739 = vld [vmem:[#allocation4 + $0xc0] sm:$0xff]
        %v740 = vld [vmem:[#allocation4 + $0xc8] sm:$0xff]
        %v741 = vld [vmem:[#allocation4 + $0xd0] sm:$0xff]
        %v742 = vld [vmem:[#allocation4 + $0xd8] sm:$0xff]
        %v743 = vld [vmem:[#allocation4 + $0xe0] sm:$0xff]
        %v744 = vld [vmem:[#allocation4 + $0xe8] sm:$0xff]
        %v745 = vld [vmem:[#allocation4 + $0xf0] sm:$0xff]
        %v746 = vld [vmem:[#allocation4 + $0xf8] sm:$0xff]
        %v748 = vlaneseq
        %v749 = vshrl.u32 %v748, 7
        %v750 = vsub.s32 0, %v749
        %v751 = vrot.slane %v260, %v750
        %753 = vmatprep.subr.mxu0 0.0
        %754 = vmatpush1.msra.mxu0 %v715
        %755 = vmatprep.subr.mxu0 0.0
        %756 = vmatpush1.msra.mxu0 %v716
        %757 = vmatprep.subr.mxu0 0.0
        %758 = vmatpush1.msra.mxu0 %v717
        %759 = vmatprep.subr.mxu0 0.0
        %760 = vmatpush1.msra.mxu0 %v718
        %761 = vmatprep.subr.mxu0 0.0
        %762 = vmatpush1.msra.mxu0 %v719
        %763 = vmatprep.subr.mxu0 0.0
        %764 = vmatpush1.msra.mxu0 %v720
        %765 = vmatprep.subr.mxu0 0.0
        %766 = vmatpush1.msra.mxu0 %v721
        %767 = vmatprep.subr.mxu0 0.0
        %768 = vmatpush1.msra.mxu0 %v722
        %769 = vmatprep.subr.mxu0 0.0
        %770 = vmatpush1.msra.mxu0 %v723
        %771 = vmatprep.subr.mxu0 0.0
        %772 = vmatpush1.msra.mxu0 %v724
        %773 = vmatprep.subr.mxu0 0.0
        %774 = vmatpush1.msra.mxu0 %v725
        %775 = vmatprep.subr.mxu0 0.0
        %776 = vmatpush1.msra.mxu0 %v726
        %777 = vmatprep.subr.mxu0 0.0
        %778 = vmatpush1.msra.mxu0 %v727
        %779 = vmatprep.subr.mxu0 0.0
        %780 = vmatpush1.msra.mxu0 %v728
        %781 = vmatprep.subr.mxu0 0.0
        %782 = vmatpush1.msra.mxu0 %v729
        %783 = vmatprep.subr.mxu0 0.0
        %784 = vmatpush1.msra.mxu0 %v730
        %785 = vmatprep.subr.mxu0 0.0
        %786 = vmatpush1.msra.mxu0 %v731
        %787 = vmatprep.subr.mxu0 0.0
        %788 = vmatpush1.msra.mxu0 %v732
        %789 = vmatprep.subr.mxu0 0.0
        %790 = vmatpush1.msra.mxu0 %v733
        %791 = vmatprep.subr.mxu0 0.0
        %792 = vmatpush1.msra.mxu0 %v734
        %793 = vmatprep.subr.mxu0 0.0
        %794 = vmatpush1.msra.mxu0 %v735
        %795 = vmatprep.subr.mxu0 0.0
        %796 = vmatpush1.msra.mxu0 %v736
        %797 = vmatprep.subr.mxu0 0.0
        %798 = vmatpush1.msra.mxu0 %v737
        %799 = vmatprep.subr.mxu0 0.0
        %800 = vmatpush1.msra.mxu0 %v738
        %801 = vmatprep.subr.mxu0 0.0
        %802 = vmatpush1.msra.mxu0 %v739
        %803 = vmatprep.subr.mxu0 0.0
        %804 = vmatpush1.msra.mxu0 %v740
        %805 = vmatprep.subr.mxu0 0.0
        %806 = vmatpush1.msra.mxu0 %v741
        %807 = vmatprep.subr.mxu0 0.0
        %808 = vmatpush1.msra.mxu0 %v742
        %809 = vmatprep.subr.mxu0 0.0
        %810 = vmatpush1.msra.mxu0 %v743
        %811 = vmatprep.subr.mxu0 0.0
        %812 = vmatpush1.msra.mxu0 %v744
        %813 = vmatprep.subr.mxu0 0.0
        %814 = vmatpush1.msra.mxu0 %v745
        %815 = vmatprep.subr.mxu0 0.0
        %816 = vmatpush1.msra.mxu0 %v746
        %817 = vmatprep.mubr.f32.mxu0 %v712
        %818 = vmatmul.mubr.f32.gmra.mrb[0].mxu0 %v711
        %v819 = vpop.f32.mrb[0].mxu0
        %v820 = vadd.f32 %v751, %v819
        %v821 = vpop.f32.mrb[0].mxu0
        %822 = vmatprep.mubr.f32.mxu0 %v714
        %823 = vmatmul.mubr.f32.gmra.mrb[0].mxu0 %v713
        %v824 = vpop.f32.mrb[0].mxu0
        %v825 = vadd.f32 %v751, %v824
        %v826 = vpop.f32.mrb[0].mxu0
        %827 = vdwg.mxu0
        %vm828 = vcmask 64512
        %829 = vst.msk [vmem:[%s256] sm:$0xff] %vm828, %v820
        %830 = vst.msk [vmem:[%s256 + $0x8] sm:$0xff] %vm828, %v825
        %s831 = smul.u32 2, %s18
        %p832 = scmp.lt.s32.totalorder %s831, 3
        %s833 = scalar_select %p832, %s831, 3
        %s834 = smul.addr %s833, 8
        %s835 = scalar_lea.vmem %s5, %s834
        // Predicated region
        $region49: #{cnn_forward.1} parent=39 // pred_check
          %p836 = pneg %p146
        $region50: #{cnn_forward.1} parent=39 // pred_check_branch
          %838 = sbr.rel (%p836) target = $region52
        $region51: #{cnn_forward.1} parent=39 // pred_region
          %s839 = smul.u32 2, %s18
        $region52: #{cnn_forward.1} parent=39 // pred_fallthru
          _
      $region40: #{cnn_forward.1} parent=5 // pred_fallthru
        _
      %p840 = scmp.le.s32.totalorder 2, %s13
      // Predicated region
      $region53: #{cnn_forward.1} parent=5 // pred_check
        %p841 = pneg %p840
      $region54: #{cnn_forward.1} parent=5 // pred_check_branch
        %843 = sbr.rel (%p841) target = $region56
      $region55: #{cnn_forward.1} parent=5 // pred_region
        %s844 = ssub.s32 %s13, 2
        // Predicated region
        $region57: #{cnn_forward.1} parent=55 // pred_check
          %p845 = pneg %p152
        $region58: #{cnn_forward.1} parent=55 // pred_check_branch
          %847 = sbr.rel (%p845) target = $region60
        $region59: #{cnn_forward.1} parent=55 // pred_region
          %s848 = smul.u32 2, %s19
          %p849 = scmp.lt.s32.totalorder %s848, 3
          %s850 = scalar_select %p849, %s848, 3
          %s851 = smul.addr %s850, 8
          %s852 = scalar_lea.vmem %s5, %s851
        $region60: #{cnn_forward.1} parent=55 // pred_fallthru
          _
      $region56: #{cnn_forward.1} parent=5 // pred_fallthru
        _
    $region6: #{cnn_forward.1} parent=1 // loop_footer
      %s17 = sadd.s32 1, %s13
    $region7: #{cnn_forward.1} parent=1 // loop_footer_branch
      %12 = sbr.rel target = $region3
    $region8: #{cnn_forward.1} parent=1 // loop_exit
      _
    %853 = vsyncpa [#allocation3], 1
    %s854 = scalar_lea.sflag [#allocation3], 1
    %855 = vsyncpa %s854, 1
    %856 = vsyncpa [#allocation5], 1

</llo_original>
